<compile_context>
chip_gen: v7x
topology: tpu7x:2x2x1
jax: 0.10.0
libtpu: 0.0.40
codegen_flags: <defaults>
</compile_context>

<pallas_src>
import jax
import jax.numpy as jnp
from jax.experimental import pallas as pl
from jax.experimental.pallas import tpu as pltpu


# ------------------------------ kernels --------------------------------------


def _make_kernel(has_bias: bool, accum_in_out: bool):
    """Build a tiled-matmul kernel body.

    Grid is (M-tiles, N-tiles, K-tiles) with K innermost ("arbitrary").
    x tiles are cast to the weight dtype in-kernel; accumulation is f32.
    """

    def _dot(x_ref, wt_ref):
        return jnp.dot(x_ref[...].astype(wt_ref.dtype), wt_ref[...],
                       preferred_element_type=jnp.float32)

    if accum_in_out:
        # o_ref is f32 and block-resident across the K axis: accumulate into
        # it directly and skip the scratch accumulator + finalize copy.
        def kernel(*refs):
            if has_bias:
                x_ref, wt_ref, b_ref, o_ref = refs
            else:
                x_ref, wt_ref, o_ref = refs
            k = pl.program_id(2)

            @pl.when(k == 0)
            def _():
                o_ref[...] = jnp.zeros_like(o_ref)

            o_ref[...] += _dot(x_ref, wt_ref)

            if has_bias:
                @pl.when(k == pl.num_programs(2) - 1)
                def _():
                    o_ref[...] += b_ref[...]
    else:
        def kernel(*refs):
            if has_bias:
                x_ref, wt_ref, b_ref, o_ref, acc_ref = refs
            else:
                x_ref, wt_ref, o_ref, acc_ref = refs
            k = pl.program_id(2)

            @pl.when(k == 0)
            def _():
                acc_ref[...] = jnp.zeros_like(acc_ref)

            acc_ref[...] += _dot(x_ref, wt_ref)

            @pl.when(k == pl.num_programs(2) - 1)
            def _():
                res = acc_ref[...]
                if has_bias:
                    res = res + b_ref[...]
                o_ref[...] = res.astype(o_ref.dtype)

    return kernel


# --------------------------- tiling helpers -----------------------------------


def _round_up(x, m):
    return ((x + m - 1) // m) * m


def _choose_tile(dim, target, aligns):
    """Pick a tile for `dim`.

    Returns (tile, padded_dim): `tile` is a multiple of one of `aligns`
    (preferred, coarser alignment first) and `padded_dim` is the tile
    multiple the array is zero-padded to.  Never returns a tile larger than
    the aligned target, so VMEM stays bounded for non-divisible dims.
    """
    amin = aligns[-1]
    if dim <= target:
        tile = _round_up(dim, amin)
        return tile, tile
    for a in aligns:                      # divisor search, coarse align first
        t = (target // a) * a
        while t >= a:
            if dim % t == 0:
                return t, dim
            t -= a
    tile = max((target // aligns[0]) * aligns[0], amin)
    return tile, _round_up(dim, tile)


def _linear_pallas(x2, wt, bias, *, out_dtype, tm, tn, tk):
    """out = x2 @ wt (+ bias).   x2: (M, K) any float dtype,  wt: (K, N)."""
    M, K = x2.shape
    K2, N = wt.shape
    assert K == K2, (K, K2)

    if tk is None:
        tk = 1024 if K >= 2048 else 512

    tm, Mp = _choose_tile(M, tm, aligns=(128, 16))
    tn, Np = _choose_tile(N, tn, aligns=(256, 128))
    tk, Kp = _choose_tile(K, tk, aligns=(256, 128))

    # Megacore: with a single (i, j) block the second TensorCore would idle;
    # halve tn so the parallel axes expose >= 2 blocks (free ~2x on v7x).
    if (Mp // tm) * (Np // tn) < 2 and tn % 256 == 0:
        tn //= 2

    # Zero-pad non-divisible dims (zeros contribute nothing to the dot).
    if (Mp, Kp) != (M, K):
        x2 = jnp.pad(x2, ((0, Mp - M), (0, Kp - K)))
    if (Kp, Np) != (K, N):
        wt = jnp.pad(wt, ((0, Kp - K), (0, Np - N)))
    b = None
    if bias is not None:
        b = bias.astype(jnp.float32).reshape(1, N)
        if Np != N:
            b = jnp.pad(b, ((0, 0), (0, Np - N)))

    grid = (Mp // tm, Np // tn, Kp // tk)
    accum_in_out = jnp.dtype(out_dtype) == jnp.float32

    x_spec = pl.BlockSpec((tm, tk), lambda i, j, k: (i, k))
    w_spec = pl.BlockSpec((tk, tn), lambda i, j, k: (k, j))
    o_spec = pl.BlockSpec((tm, tn), lambda i, j, k: (i, j))
    in_specs = [x_spec, w_spec]
    operands = [x2, wt]
    if bias is not None:
        in_specs.append(pl.BlockSpec((1, tn), lambda i, j, k: (0, j)))
        operands.append(b)
    scratch = [] if accum_in_out else [pltpu.VMEM((tm, tn), jnp.float32)]

    x_bytes = jnp.dtype(x2.dtype).itemsize
    w_bytes = jnp.dtype(wt.dtype).itemsize
    o_bytes = jnp.dtype(out_dtype).itemsize
    # Double-buffered operand/output tiles + f32 accumulator (+ bias block).
    vmem_est = (2 * (tm * tk * x_bytes + tk * tn * w_bytes + tm * tn * o_bytes)
                + tm * tn * 4 + (2 * tn * 4 if bias is not None else 0))
    vmem_limit = int(min(64 * 2**20, max(32 * 2**20, 1.5 * vmem_est)))

    cost = pl.CostEstimate(
        flops=2 * Mp * Np * Kp,
        transcendentals=0,
        bytes_accessed=(Mp * Kp * x_bytes + Kp * Np * w_bytes
                        + Mp * Np * o_bytes
                        + (Np * 4 if bias is not None else 0)),
    )

    out = pl.pallas_call(
        _make_kernel(bias is not None, accum_in_out),
        out_shape=jax.ShapeDtypeStruct((Mp, Np), out_dtype),
        grid_spec=pltpu.PrefetchScalarGridSpec(
            num_scalar_prefetch=0,
            grid=grid,
            in_specs=in_specs,
            out_specs=o_spec,
            scratch_shapes=scratch),
        compiler_params=pltpu.CompilerParams(
            dimension_semantics=("parallel", "parallel", "arbitrary"),
            vmem_limit_bytes=vmem_limit),
        cost_estimate=cost,
    )(*operands)

    if (Mp, Np) != (M, N):
        out = out[:M, :N]
    return out


# ------------------------------ public API ------------------------------------


def prepare_row_weight(trainable_weight, non_trainable_weight,
                       compute_dtype=jnp.bfloat16):
    """One-time weight prep; hot-loop callers should reuse the result.

    Concatenates the trainable/frozen row blocks into the full (N, K) Linear
    weight and repacks it as a lane-dense (K, N) matrix in `compute_dtype`,
    so the kernel runs a canonical (M,K)x(K,N) MXU matmul with no in-kernel
    transpose.  Re-run only when the trainable rows change (once per
    optimizer step), NOT every forward call.
    """
    full_weight = jnp.concatenate([trainable_weight, non_trainable_weight],
                                  axis=0)          # (N, K)
    return full_weight.T.astype(compute_dtype)     # (K, N)


def row_forward_prepared(x, wt, bias=None, *, tm=512, tn=512, tk=None):
    """Hot-path forward.  x: (..., K),  wt: (K, N) from prepare_row_weight."""
    K, N = wt.shape
    orig_shape = x.shape
    x2 = x.reshape(-1, K)        # keep original dtype; kernel casts per tile
    out = _linear_pallas(x2, wt, bias, out_dtype=x.dtype, tm=tm, tn=tn, tk=tk)
    return out.reshape(orig_shape[:-1] + (N,))


def row_forward(x, trainable_weight, non_trainable_weight, bias=None, *,
                compute_dtype=jnp.bfloat16, tm=512, tn=512, tk=None):
    """Convenience wrapper matching `row.forward` (preps the weight per call).

    For repeated calls with a fixed weight, call `prepare_row_weight` once
    and use `row_forward_prepared` instead (saves 2-3 HBM passes over the
    full N x K weight per forward).
    """
    wt = prepare_row_weight(trainable_weight, non_trainable_weight,
                            compute_dtype)
    return row_forward_prepared(x, wt, bias, tm=tm, tn=tn, tk=tk)


# -------------------------------- test ----------------------------------------


if __name__ == "__main__":
    key = jax.random.PRNGKey(0)
    k_w, k_b, k_x, k_w2, k_b2 = jax.random.split(key, 5)

    # nn.Linear(256, 256), rank=4, batch=2, seq=8.
    batch, seq = 2, 8
    in_features, out_features = 256, 256
    rank = 4

    full_w = jax.random.normal(k_w, (out_features, in_features), jnp.float32) * 0.1
    bias = jax.random.normal(k_b, (out_features,), jnp.float32) * 0.1
    x = jax.random.normal(k_x, (batch, seq, in_features), jnp.float32)

    trainable_weight = full_w[:rank, :]
    non_trainable_weight = full_w[rank:, :]

    # Reference (same semantics as torch F.linear). Loose tolerance accounts
    # for the bf16 operand rounding (accumulation is f32 in-kernel).
    ref = jnp.einsum("bsk,nk->bsn", x, full_w) + bias

    # Hot path: weight packed once, reused across calls.
    wt = prepare_row_weight(trainable_weight, non_trainable_weight)

    # Small explicit tiles -> (1, 2, 2) grid, exercising the K accumulator.
    out = jax.block_until_ready(
        row_forward_prepared(x, wt, bias, tm=16, tn=128, tk=128))
    assert out.shape == (batch, seq, out_features)
    assert out.dtype == x.dtype
    assert jnp.allclose(out, ref, atol=5e-2, rtol=5e-2), \
        float(jnp.max(jnp.abs(out - ref)))

    # bias=None path (bias operand skipped entirely).
    out_nb = jax.block_until_ready(
        row_forward_prepared(x, wt, None, tm=16, tn=128, tk=128))
    assert jnp.allclose(out_nb, ref - bias, atol=5e-2, rtol=5e-2)

    # bf16 activations -> scratch-accumulator kernel variant, default tiles.
    out_bf16 = jax.block_until_ready(
        row_forward_prepared(x.astype(jnp.bfloat16), wt, bias))
    assert out_bf16.dtype == jnp.bfloat16
    assert jnp.allclose(out_bf16.astype(jnp.float32), ref, atol=1e-1, rtol=1e-1)

    # Non-divisible dims -> zero-padding + output-slicing path, through the
    # convenience (per-call prep) wrapper.
    in2, out2 = 200, 200
    full_w2 = jax.random.normal(k_w2, (out2, in2), jnp.float32) * 0.1
    bias2 = jax.random.normal(k_b2, (out2,), jnp.float32) * 0.1
    x_odd = jax.random.normal(k_x, (batch, seq, in2), jnp.float32)
    out_pad = jax.block_until_ready(
        row_forward(x_odd, full_w2[:rank, :], full_w2[rank:, :], bias2))
    ref2 = jnp.einsum("bsk,nk->bsn", x_odd, full_w2) + bias2
    assert out_pad.shape == (batch, seq, out2)
    assert jnp.allclose(out_pad, ref2, atol=5e-2, rtol=5e-2), \
        float(jnp.max(jnp.abs(out_pad - ref2)))

    print("KERNEL_OK")
</pallas_src>

<mosaic_0001>
module attributes {stable_mosaic.version = 11 : i64} {
  func.func @kernel(%arg0: i32, %arg1: i32, %arg2: i32, %arg3: memref<16x128xf32, #tpu.memory_space<vmem>>, %arg4: memref<128x128xbf16, #tpu.memory_space<vmem>>, %arg5: memref<1x128xf32, #tpu.memory_space<vmem>>, %arg6: memref<16x128xf32, #tpu.memory_space<vmem>>) attributes {dimension_semantics = [#tpu.dimension_semantics<parallel>, #tpu.dimension_semantics<parallel>, #tpu.dimension_semantics<arbitrary>], iteration_bounds = array<i64: 1, 2, 2>, scalar_prefetch = 0 : i64, scratch_operands = 0 : i64, tpu.core_type = #tpu.core_type<tc>, window_params = [{transform_indices = @transform_0, window_bounds = array<i64: 16, 128>}, {transform_indices = @transform_1, window_bounds = array<i64: 128, 128>}, {transform_indices = @transform_2, window_bounds = array<i64: 1, 128>}, {transform_indices = @transform_3, window_bounds = array<i64: 16, 128>}]} {
    %c0_i32 = arith.constant 0 : i32
    %0 = arith.cmpi eq, %arg2, %c0_i32 : i32
    %1 = arith.extui %0 : i1 to i32
    %c0_i32_0 = arith.constant 0 : i32
    %2 = arith.cmpi ne, %1, %c0_i32_0 : i32
    scf.if %2 {
      %cst_9 = arith.constant 0.000000e+00 : f32
      %13 = vector.broadcast %cst_9 : f32 to vector<16x128xf32>
      %c0_10 = arith.constant 0 : index
      %c0_11 = arith.constant 0 : index
      %14 = vector.load %arg6[%c0_10, %c0_11] : memref<16x128xf32, #tpu.memory_space<vmem>>, vector<16x128xf32>
      tpu.vector_store %arg6[%c0_10, %c0_11], %13 {strides = array<i32>} : memref<16x128xf32, #tpu.memory_space<vmem>>, vector<16x128xf32>,
    } else {
    }
    %c0 = arith.constant 0 : index
    %c0_1 = arith.constant 0 : index
    %3 = vector.load %arg6[%c0, %c0_1] : memref<16x128xf32, #tpu.memory_space<vmem>>, vector<16x128xf32>
    %c0_2 = arith.constant 0 : index
    %c0_3 = arith.constant 0 : index
    %4 = vector.load %arg3[%c0_2, %c0_3] : memref<16x128xf32, #tpu.memory_space<vmem>>, vector<16x128xf32>
    %5 = arith.truncf %4 : vector<16x128xf32> to vector<16x128xbf16>
    %c0_4 = arith.constant 0 : index
    %c0_5 = arith.constant 0 : index
    %6 = vector.load %arg4[%c0_4, %c0_5] : memref<128x128xbf16, #tpu.memory_space<vmem>>, vector<128x128xbf16>
    %cst = arith.constant dense<0.000000e+00> : vector<16x128xf32>
    %7 = tpu.matmul %5, %6, %cst {dimension_numbers = #tpu.dot_dimension_numbers<[1], [0], [0], [1], [0, 0, 1, 1], [], []>} : vector<16x128xbf16>, vector<128x128xbf16>, vector<16x128xf32> -> vector<16x128xf32>
    %8 = arith.addf %3, %7 : vector<16x128xf32>
    %c0_6 = arith.constant 0 : index
    %c0_7 = arith.constant 0 : index
    %9 = vector.load %arg6[%c0_6, %c0_7] : memref<16x128xf32, #tpu.memory_space<vmem>>, vector<16x128xf32>
    tpu.vector_store %arg6[%c0_6, %c0_7], %8 {strides = array<i32>} : memref<16x128xf32, #tpu.memory_space<vmem>>, vector<16x128xf32>,
    %c1_i32 = arith.constant 1 : i32
    %10 = arith.cmpi eq, %arg2, %c1_i32 : i32
    %11 = arith.extui %10 : i1 to i32
    %c0_i32_8 = arith.constant 0 : i32
    %12 = arith.cmpi ne, %11, %c0_i32_8 : i32
    scf.if %12 {
      %c0_9 = arith.constant 0 : index
      %c0_10 = arith.constant 0 : index
      %13 = vector.load %arg6[%c0_9, %c0_10] : memref<16x128xf32, #tpu.memory_space<vmem>>, vector<16x128xf32>
      %c0_11 = arith.constant 0 : index
      %c0_12 = arith.constant 0 : index
      %14 = vector.load %arg5[%c0_11, %c0_12] : memref<1x128xf32, #tpu.memory_space<vmem>>, vector<1x128xf32>
      %15 = vector.broadcast %14 : vector<1x128xf32> to vector<16x128xf32>
      %16 = arith.addf %13, %15 : vector<16x128xf32>
      %c0_13 = arith.constant 0 : index
      %c0_14 = arith.constant 0 : index
      %17 = vector.load %arg6[%c0_13, %c0_14] : memref<16x128xf32, #tpu.memory_space<vmem>>, vector<16x128xf32>
      tpu.vector_store %arg6[%c0_13, %c0_14], %16 {strides = array<i32>} : memref<16x128xf32, #tpu.memory_space<vmem>>, vector<16x128xf32>,
    } else {
    }
    return
  }
  func.func @transform_0(%arg0: i32, %arg1: i32, %arg2: i32) -> (i32, i32) {
    %c0_i32 = arith.constant 0 : i32
    return %arg0, %arg2 : i32, i32
  }
  func.func @transform_1(%arg0: i32, %arg1: i32, %arg2: i32) -> (i32, i32) {
    %c0_i32 = arith.constant 0 : i32
    return %arg2, %arg1 : i32, i32
  }
  func.func @transform_2(%arg0: i32, %arg1: i32, %arg2: i32) -> (i32, i32) {
    %c0_i32 = arith.constant 0 : i32
    %c0_i32_0 = arith.constant 0 : i32
    return %c0_i32, %arg1 : i32, i32
  }
  func.func @transform_3(%arg0: i32, %arg1: i32, %arg2: i32) -> (i32, i32) {
    %c0_i32 = arith.constant 0 : i32
    return %arg0, %arg1 : i32, i32
  }
}

</mosaic_0001>

<llo_original>
// kernel: tpu_custom_call.1
$region0: #{tpu_custom_call.1}
  #allocation0 [shape = 'u32[]', space=smem, size = 0x4, offset = 0x4, fixed_abs, tag = 'smem constant byte address 0x4 - core index']
  #allocation1 [shape = 'u32[144,128]{1,0:T(1,128)}', space=vmem, size = 0x12000, scoped, tag = 'internal scratch']
  %s0 = inlined_call_operand.hbm [shape: f32[16,256], index: 0, kind: input, shape index: {}]
  %s1 = inlined_call_operand.hbm [shape: bf16[256,256], index: 1, kind: input, shape index: {}]
  %s2 = inlined_call_operand.vmem [shape: f32[1,256], index: 2, kind: input, shape index: {}]
  %s3 = inlined_call_operand.hbm [shape: f32[16,256], index: 3, kind: output, shape index: {}]
  %s4 = sld [smem:[#allocation0]]
  $region61: #{tpu_custom_call.1} parent=0
    _
  %s6 = ssub.s32 1, %s4
  %s7 = scalar_select 0, %s6, %s4
  $region1: #{tpu_custom_call.1} parent=0
    #allocation2 [shape = 'u8[16384]{0}', space=vmem, size = 0x4000, scoped, tag = 'input window, operand 0']
    #allocation3 [shape = 's32[2]{0}', space=sflag, size = 0x8, scoped, tag = 'scoped memory for tpu_custom_call.1']
    #allocation4 [shape = 's32[2]{0}', space=sflag, size = 0x8, scoped, tag = 'scoped memory for tpu_custom_call.1']
    #allocation5 [shape = 'u8[65536]{0}', space=vmem, size = 0x10000, scoped, tag = 'input window, operand 1']
    #allocation6 [shape = 's32[2]{0}', space=sflag, size = 0x8, scoped, tag = 'scoped memory for tpu_custom_call.1']
    #allocation7 [shape = 'u8[16384]{0}', space=vmem, size = 0x4000, scoped, tag = 'output window, operand 0']
    %8 = vsyncpa [#allocation3], 0
    %s9 = scalar_lea.sflag [#allocation3], 1
    %10 = vsyncpa %s9, 0
    %11 = vsyncpa [#allocation6], 0
    %s12 = scalar_lea.sflag [#allocation6], 1
    %13 = vsyncpa %s12, 0
    %14 = vsyncpa [#allocation4], 0
    %s15 = scalar_lea.sflag [#allocation4], 1
    %16 = vsyncpa %s15, 0
    loop: start=0, step=1, limit=6
    $region2: #{tpu_custom_call.1} parent=1 // loop_pre_header
      _
    $region3: #{tpu_custom_call.1} parent=1 // loop_header
      %s18 = sphi 0, %s22
      %p19 = scmp.ge.s32.totalorder %s18, 6
      %s25 = sphi 0, %s44
      %s26 = sphi 0, %s40
      %s27 = sphi 0, %s36
      %s28 = sphi 0, %s25
      %s29 = sphi 0, %s26
      %s30 = sphi 0, %s27
      %s31 = sphi 0, %s28
      %s32 = sphi 0, %s29
      %s33 = sphi 0, %s30
      %s49 = sphi 0, %s51
      %s52 = sphi 0, %s49
      %s53 = sphi 0, %s52
      %s69 = sphi 0, %s53
      %s77 = sphi 0, %s79
      %s80 = sphi 0, %s77
      %s81 = sphi 0, %s80
      %s97 = sphi 0, %s81
      %s103 = sphi 0, %s105
      %s106 = sphi 0, %s103
      %s107 = sphi 0, %s106
      %s123 = sphi 0, %s107
      %s131 = sphi 0, %s133
      %s134 = sphi 0, %s131
      %s135 = sphi 0, %s134
      %s151 = sphi 0, %s135
    $region4: #{tpu_custom_call.1} parent=1 // loop_header_branch
      %21 = sbr.rel (%p19) target = $region8
    $region5: #{tpu_custom_call.1} parent=1 // loop_body
      %s23 = ssub.s32 %s18, 1
      %s24 = ssub.s32 %s18, 2
      %s34 = sadd.s32 1, %s27
      %p35 = scmp.ge.s32.totalorder %s34, 2
      %s36 = scalar_select %p35, 0, %s34
      %s37 = sadd.s32 1, %s26
      %s38 = scalar_select %p35, %s37, %s26
      %p39 = scmp.ge.s32.totalorder %s38, 2
      %s40 = scalar_select %p39, 0, %s38
      %s41 = sadd.s32 1, %s25
      %s42 = scalar_select %p39, %s41, %s25
      %p43 = scmp.ge.s32.totalorder %s42, 1
      %s44 = scalar_select %p43, 0, %s42
      %s45 = ssub.s32 %s25, %s44
      %s46 = ssub.s32 %s27, %s36
      %s47 = sor.u32 %s45, %s46
      %p48 = scmp.eq.s32.totalorder %s47, 0
      %s50 = sadd.s32 %s49, 1
      %s51 = scalar_select %p48, %s49, %s50
      %p54 = pneg %p48
      %p55 = scmp.eq.s32.totalorder %s18, 3
      %p56 = por %p54, %p55
      %p57 = scmp.ne.s32.totalorder %s49, %s52
      %p58 = scmp.eq.s32.totalorder %s18, 0
      %p59 = por %p57, %p58
      %p60 = scmp.ne.s32.totalorder %s49, %s52
      %p61 = scmp.eq.s32.totalorder %s23, 3
      %p62 = por %p60, %p61
      %p63 = scmp.ne.s32.totalorder %s52, %s53
      %p64 = scmp.eq.s32.totalorder %s23, 0
      %p65 = por %p63, %p64
      %p66 = scmp.ne.s32.totalorder %s52, %s53
      %p67 = scmp.eq.s32.totalorder %s24, 3
      %p68 = por %p66, %p67
      %p70 = scmp.ne.s32.totalorder %s53, %s69
      %p71 = scmp.eq.s32.totalorder %s24, 0
      %p72 = por %p70, %p71
      %s73 = ssub.s32 %s27, %s36
      %s74 = ssub.s32 %s26, %s40
      %s75 = sor.u32 %s73, %s74
      %p76 = scmp.eq.s32.totalorder %s75, 0
      %s78 = sadd.s32 %s77, 1
      %s79 = scalar_select %p76, %s77, %s78
      %p82 = pneg %p76
      %p83 = scmp.eq.s32.totalorder %s18, 3
      %p84 = por %p82, %p83
      %p85 = scmp.ne.s32.totalorder %s77, %s80
      %p86 = scmp.eq.s32.totalorder %s18, 0
      %p87 = por %p85, %p86
      %p88 = scmp.ne.s32.totalorder %s77, %s80
      %p89 = scmp.eq.s32.totalorder %s23, 3
      %p90 = por %p88, %p89
      %p91 = scmp.ne.s32.totalorder %s80, %s81
      %p92 = scmp.eq.s32.totalorder %s23, 0
      %p93 = por %p91, %p92
      %p94 = scmp.ne.s32.totalorder %s80, %s81
      %p95 = scmp.eq.s32.totalorder %s24, 3
      %p96 = por %p94, %p95
      %p98 = scmp.ne.s32.totalorder %s81, %s97
      %p99 = scmp.eq.s32.totalorder %s24, 0
      %p100 = por %p98, %p99
      %s101 = ssub.s32 %s26, %s40
      %p102 = scmp.eq.s32.totalorder %s101, 0
      %s104 = sadd.s32 %s103, 1
      %s105 = scalar_select %p102, %s103, %s104
      %p108 = pneg %p102
      %p109 = scmp.eq.s32.totalorder %s18, 3
      %p110 = por %p108, %p109
      %p111 = scmp.ne.s32.totalorder %s103, %s106
      %p112 = scmp.eq.s32.totalorder %s18, 0
      %p113 = por %p111, %p112
      %p114 = scmp.ne.s32.totalorder %s103, %s106
      %p115 = scmp.eq.s32.totalorder %s23, 3
      %p116 = por %p114, %p115
      %p117 = scmp.ne.s32.totalorder %s106, %s107
      %p118 = scmp.eq.s32.totalorder %s23, 0
      %p119 = por %p117, %p118
      %p120 = scmp.ne.s32.totalorder %s106, %s107
      %p121 = scmp.eq.s32.totalorder %s24, 3
      %p122 = por %p120, %p121
      %p124 = scmp.ne.s32.totalorder %s107, %s123
      %p125 = scmp.eq.s32.totalorder %s24, 0
      %p126 = por %p124, %p125
      %s127 = ssub.s32 %s25, %s44
      %s128 = ssub.s32 %s26, %s40
      %s129 = sor.u32 %s127, %s128
      %p130 = scmp.eq.s32.totalorder %s129, 0
      %s132 = sadd.s32 %s131, 1
      %s133 = scalar_select %p130, %s131, %s132
      %p136 = pneg %p130
      %p137 = scmp.eq.s32.totalorder %s18, 3
      %p138 = por %p136, %p137
      %p139 = scmp.ne.s32.totalorder %s131, %s134
      %p140 = scmp.eq.s32.totalorder %s18, 0
      %p141 = por %p139, %p140
      %p142 = scmp.ne.s32.totalorder %s131, %s134
      %p143 = scmp.eq.s32.totalorder %s23, 3
      %p144 = por %p142, %p143
      %p145 = scmp.ne.s32.totalorder %s134, %s135
      %p146 = scmp.eq.s32.totalorder %s23, 0
      %p147 = por %p145, %p146
      %p148 = scmp.ne.s32.totalorder %s134, %s135
      %p149 = scmp.eq.s32.totalorder %s24, 3
      %p150 = por %p148, %p149
      %p152 = scmp.ne.s32.totalorder %s135, %s151
      %p153 = scmp.eq.s32.totalorder %s24, 0
      %p154 = por %p152, %p153
      %p155 = scmp.le.s32.totalorder 1, %s18
      %p156 = scmp.lt.s32.totalorder %s18, 5
      %p157 = pnand %p155, %p156
      %p158 = pneg %p157
      // Predicated region
      $region9: #{tpu_custom_call.1} parent=5 // pred_check
        _
      $region10: #{tpu_custom_call.1} parent=5 // pred_check_branch
        %160 = sbr.rel (%p157) target = $region12
      $region11: #{tpu_custom_call.1} parent=5 // pred_region
        %s161 = ssub.s32 %s18, 1
      $region12: #{tpu_custom_call.1} parent=5 // pred_fallthru
        _
      %p162 = scmp.lt.s32.totalorder %s18, 4
      // Predicated region
      $region13: #{tpu_custom_call.1} parent=5 // pred_check
        %p163 = pneg %p162
      $region14: #{tpu_custom_call.1} parent=5 // pred_check_branch
        %165 = sbr.rel (%p163) target = $region16
      $region15: #{tpu_custom_call.1} parent=5 // pred_region
        // Predicated region
        $region17: #{tpu_custom_call.1} parent=15 // pred_check
          %p166 = pneg %p59
        $region18: #{tpu_custom_call.1} parent=15 // pred_check_branch
          %168 = sbr.rel (%p166) target = $region20
        $region19: #{tpu_custom_call.1} parent=15 // pred_region
          %s169 = sand.u32 %s49, 1
          %s170 = scalar_lea.sflag [#allocation3], %s169
          %s171 = sand.u32 %s49, 1
          %s172 = smul.addr %s171, 16
          %s173 = scalar_lea.vmem [#allocation2], %s172
          %s174 = smul.u32 2, %s25
          %s176 = ssub.s32 256, 256
          %177 = vsyncadd %s170, %s176
          %s178 = smul.addr %s174, 2
          %s179 = sadd.s32 %s27, %s178
          %s180 = smul.addr %s179, 128
          %s181 = scalar_lea.hbm %s0, %s180
          %s182 = sshll.u32 %s173, 4
          %s183 = int_to_ptr.vmem [resolvable:$true] %s182
          %188 = dma.hbm_to_vmem [thread:$0]  %s181, 256, %s183, %s170, 256, 128, 8
        $region20: #{tpu_custom_call.1} parent=15 // pred_fallthru
          _
        // Predicated region
        $region21: #{tpu_custom_call.1} parent=15 // pred_check
          %p189 = pneg %p87
        $region22: #{tpu_custom_call.1} parent=15 // pred_check_branch
          %191 = sbr.rel (%p189) target = $region24
        $region23: #{tpu_custom_call.1} parent=15 // pred_region
          %s192 = sand.u32 %s77, 1
          %s193 = scalar_lea.sflag [#allocation6], %s192
          %s194 = sand.u32 %s77, 1
          %s195 = smul.addr %s194, 64
          %s196 = scalar_lea.vmem [#allocation5], %s195
          %s197 = smul.u32 16, %s27
          %s199 = ssub.s32 1024, 1024
          %200 = vsyncadd %s193, %s199
          %s201 = smul.addr %s197, 2
          %s202 = sadd.s32 %s26, %s201
          %s203 = smul.addr %s202, 64
          %s204 = scalar_lea.hbm %s1, %s203
          %s205 = sshll.u32 %s196, 4
          %s206 = int_to_ptr.vmem [resolvable:$true] %s205
          %211 = dma.hbm_to_vmem [thread:$0]  %s204, 1024, %s206, %s193, 128, 64, 4
        $region24: #{tpu_custom_call.1} parent=15 // pred_fallthru
          _
        // Predicated region
        $region25: #{tpu_custom_call.1} parent=15 // pred_check
          %p212 = pneg %p113
        $region26: #{tpu_custom_call.1} parent=15 // pred_check_branch
          %214 = sbr.rel (%p212) target = $region28
        $region27: #{tpu_custom_call.1} parent=15 // pred_region
          %p215 = scmp.lt.s32.totalorder %s26, 1
          %s216 = scalar_select %p215, %s26, 1
          %s217 = scalar_lea.vmem %s2, %s216
        $region28: #{tpu_custom_call.1} parent=15 // pred_fallthru
          _
      $region16: #{tpu_custom_call.1} parent=5 // pred_fallthru
        _
      %p218 = scmp.le.s32.totalorder 1, %s18
      %p219 = scmp.lt.s32.totalorder %s18, 5
      %p220 = pnand %p218, %p219
      %p221 = pneg %p220
      // Predicated region
      $region29: #{tpu_custom_call.1} parent=5 // pred_check
        _
      $region30: #{tpu_custom_call.1} parent=5 // pred_check_branch
        %223 = sbr.rel (%p220) target = $region32
      $region31: #{tpu_custom_call.1} parent=5 // pred_region
        %s224 = ssub.s32 %s18, 1
        %s225 = sand.u32 %s52, 1
        %s226 = scalar_lea.sflag [#allocation3], %s225
        %s227 = sand.u32 %s52, 1
        %s228 = smul.addr %s227, 16
        %s229 = scalar_lea.vmem [#allocation2], %s228
        // Predicated region
        $region33: #{tpu_custom_call.1} parent=31 // pred_check
          %p230 = pneg %p65
        $region34: #{tpu_custom_call.1} parent=31 // pred_check_branch
          %232 = sbr.rel (%p230) target = $region36
        $region35: #{tpu_custom_call.1} parent=31 // pred_region
          %233 = dma.done %s226, 256
        $region36: #{tpu_custom_call.1} parent=31 // pred_fallthru
          _
        %s234 = sand.u32 %s80, 1
        %s235 = scalar_lea.sflag [#allocation6], %s234
        %s236 = sand.u32 %s80, 1
        %s237 = smul.addr %s236, 64
        %s238 = scalar_lea.vmem [#allocation5], %s237
        // Predicated region
        $region37: #{tpu_custom_call.1} parent=31 // pred_check
          %p239 = pneg %p93
        $region38: #{tpu_custom_call.1} parent=31 // pred_check_branch
          %241 = sbr.rel (%p239) target = $region40
        $region39: #{tpu_custom_call.1} parent=31 // pred_region
          %242 = dma.done %s235, 1024
        $region40: #{tpu_custom_call.1} parent=31 // pred_fallthru
          _
        %s243 = sand.u32 %s52, 1
        %s244 = scalar_lea.sflag [#allocation3], %s243
        %s245 = sand.u32 %s52, 1
        %s246 = smul.addr %s245, 16
        %s247 = scalar_lea.vmem [#allocation2], %s246
        %p248 = pneg %p65
        %p249 = pneg %p62
        %s250 = sand.u32 %s80, 1
        %s251 = scalar_lea.sflag [#allocation6], %s250
        %s252 = sand.u32 %s80, 1
        %s253 = smul.addr %s252, 64
        %s254 = scalar_lea.vmem [#allocation5], %s253
        %p255 = pneg %p93
        %p256 = pneg %p90
        %p257 = scmp.lt.s32.totalorder %s29, 1
        %s258 = scalar_select %p257, %s29, 1
        %s259 = scalar_lea.vmem %s2, %s258
        %p260 = pneg %p119
        %p261 = pneg %p116
        %p262 = pneg %p147
        %p263 = pneg %p144
        %s264 = sand.u32 %s134, 1
        %s265 = scalar_lea.sflag [#allocation4], %s264
        %s266 = sand.u32 %s134, 1
        %s267 = smul.addr %s266, 16
        %s268 = scalar_lea.vmem [#allocation7], %s267
        %s269 = smul.u32 2, %s28
        %s270 = smul.u32 16, %s30
        %p271 = scmp.lt.s32.totalorder %s29, 1
        %s272 = scalar_select %p271, %s29, 1
        %s273 = scalar_lea.vmem %s2, %s272
        %s274 = smul.u32 2, %s28
        %p276 = scmp.eq.s32.totalorder %s30, 0
        // Predicated region
        $region41: #{tpu_custom_call.1} parent=31 // pred_check
          %p277 = pneg %p276
        $region42: #{tpu_custom_call.1} parent=31 // pred_check_branch
          %279 = sbr.rel (%p277) target = $region44
        $region43: #{tpu_custom_call.1} parent=31 // pred_region
          %280 = vst [vmem:[%s268] sm:$0xff] 0.0
          %281 = vst [vmem:[%s268 + $0x8] sm:$0xff] 0.0
        $region44: #{tpu_custom_call.1} parent=31 // pred_fallthru
          _
        %v282 = vld [vmem:[%s268] sm:$0xff]
        %v283 = vld [vmem:[%s268 + $0x8] sm:$0xff]
        %v284 = vld [vmem:[%s229] sm:$0xff]
        %v285 = vld [vmem:[%s229 + $0x8] sm:$0xff]
        %v286 = vpack.c.bf16 %v285, %v284
        %v287 = vld [vmem:[%s238] sm:$0xf]
        %v288 = vld [vmem:[%s238 + $0x4] sm:$0xf]
        %v289 = vld [vmem:[%s238 + $0x8] sm:$0xf]
        %v290 = vld [vmem:[%s238 + $0xc] sm:$0xf]
        %v291 = vld [vmem:[%s238 + $0x10] sm:$0xf]
        %v292 = vld [vmem:[%s238 + $0x14] sm:$0xf]
        %v293 = vld [vmem:[%s238 + $0x18] sm:$0xf]
        %v294 = vld [vmem:[%s238 + $0x1c] sm:$0xf]
        %v295 = vld [vmem:[%s238 + $0x20] sm:$0xf]
        %v296 = vld [vmem:[%s238 + $0x24] sm:$0xf]
        %v297 = vld [vmem:[%s238 + $0x28] sm:$0xf]
        %v298 = vld [vmem:[%s238 + $0x2c] sm:$0xf]
        %v299 = vld [vmem:[%s238 + $0x30] sm:$0xf]
        %v300 = vld [vmem:[%s238 + $0x34] sm:$0xf]
        %v301 = vld [vmem:[%s238 + $0x38] sm:$0xf]
        %v302 = vld [vmem:[%s238 + $0x3c] sm:$0xf]
        %v319 = vunpack.c.l.b16 %v287
        %v320 = vunpack.c.l.b16 %v288
        %v321 = vunpack.c.l.b16 %v289
        %v322 = vunpack.c.l.b16 %v290
        %v323 = vunpack.c.l.b16 %v291
        %v324 = vunpack.c.l.b16 %v292
        %v325 = vunpack.c.l.b16 %v293
        %v326 = vunpack.c.l.b16 %v294
        %v327 = vunpack.c.l.b16 %v295
        %v328 = vunpack.c.l.b16 %v296
        %v329 = vunpack.c.l.b16 %v297
        %v330 = vunpack.c.l.b16 %v298
        %v331 = vunpack.c.l.b16 %v299
        %v332 = vunpack.c.l.b16 %v300
        %v333 = vunpack.c.l.b16 %v301
        %v334 = vunpack.c.l.b16 %v302
        %v335 = vpack.c.b16 %v320, %v319
        %v336 = vpack.c.b16 %v322, %v321
        %v337 = vpack.c.b16 %v324, %v323
        %v338 = vpack.c.b16 %v326, %v325
        %v339 = vpack.c.b16 %v328, %v327
        %v340 = vpack.c.b16 %v330, %v329
        %v341 = vpack.c.b16 %v332, %v331
        %v342 = vpack.c.b16 %v334, %v333
        %351 = vmatprep.subr.bf16.mxu0 0
        %352 = vmatpush1.bf16.msra.mxu0 %v335
        %353 = vmatprep.subr.bf16.mxu0 0
        %354 = vmatpush1.bf16.msra.mxu0 %v336
        %355 = vmatprep.subr.bf16.mxu0 0
        %356 = vmatpush1.bf16.msra.mxu0 %v337
        %357 = vmatprep.subr.bf16.mxu0 0
        %358 = vmatpush1.bf16.msra.mxu0 %v338
        %359 = vmatprep.subr.bf16.mxu0 0
        %360 = vmatpush1.bf16.msra.mxu0 %v339
        %361 = vmatprep.subr.bf16.mxu0 0
        %362 = vmatpush1.bf16.msra.mxu0 %v340
        %363 = vmatprep.subr.bf16.mxu0 0
        %364 = vmatpush1.bf16.msra.mxu0 %v341
        %365 = vmatprep.subr.bf16.mxu0 0
        %366 = vmatpush1.bf16.msra.mxu0 %v342
        %367 = vmatprep.subr.bf16.mxu0 0
        %368 = vmatpush1.bf16.msra.mxu0 0
        %369 = vmatprep.subr.bf16.mxu0 0
        %370 = vmatpush1.bf16.msra.mxu0 0
        %371 = vmatprep.subr.bf16.mxu0 0
        %372 = vmatpush1.bf16.msra.mxu0 0
        %373 = vmatprep.subr.bf16.mxu0 0
        %374 = vmatpush1.bf16.msra.mxu0 0
        %375 = vmatprep.subr.bf16.mxu0 0
        %376 = vmatpush1.bf16.msra.mxu0 0
        %377 = vmatprep.subr.bf16.mxu0 0
        %378 = vmatpush1.bf16.msra.mxu0 0
        %379 = vmatprep.subr.bf16.mxu0 0
        %380 = vmatpush1.bf16.msra.mxu0 0
        %381 = vmatprep.subr.bf16.mxu0 0
        %382 = vmatpush1.bf16.msra.mxu0 0
        %383 = vmatprep.mubr.bf16.mxu0 0
        %384 = vmatmul.mubr.bf16.gmra.mrb[0].mxu0 %v286
        %v385 = vpop.f32.mrb[0].mxu0
        %v386 = vadd.f32 0.0, %v385
        %v387 = vpop.f32.mrb[0].mxu0
        %v388 = vpop.f32.mrb[0].mxu0
        %v389 = vadd.f32 0.0, %v388
        %v390 = vpop.f32.mrb[0].mxu0
        %391 = vdwg.mxu0
        %v392 = vadd.f32 %v282, %v386
        %v393 = vadd.f32 %v283, %v389
        %394 = vst [vmem:[%s268] sm:$0xff] %v392
        %395 = vst [vmem:[%s268 + $0x8] sm:$0xff] %v393
        %p396 = scmp.eq.s32.totalorder %s30, 1
        // Predicated region
        $region45: #{tpu_custom_call.1} parent=31 // pred_check
          %p397 = pneg %p396
        $region46: #{tpu_custom_call.1} parent=31 // pred_check_branch
          %399 = sbr.rel (%p397) target = $region48
        $region47: #{tpu_custom_call.1} parent=31 // pred_region
          %v400 = vld [vmem:[%s268] sm:$0xff]
          %v401 = vld [vmem:[%s268 + $0x8] sm:$0xff]
          %v402 = vld [vmem:[%s273] sm:$0x1]
          %v404 = vlaneseq
          %v405 = vshrl.u32 %v404, 7
          %v406 = vsub.s32 0, %v405
          %v407 = vrot.slane %v402, %v406
          %v409 = vadd.f32 %v400, %v407
          %v410 = vadd.f32 %v401, %v407
          %411 = vst [vmem:[%s268] sm:$0xff] %v409
          %412 = vst [vmem:[%s268 + $0x8] sm:$0xff] %v410
        $region48: #{tpu_custom_call.1} parent=31 // pred_fallthru
          _
        %s413 = sand.u32 %s134, 1
        %s414 = scalar_lea.sflag [#allocation4], %s413
        %s415 = sand.u32 %s134, 1
        %s416 = smul.addr %s415, 16
        %s417 = scalar_lea.vmem [#allocation7], %s416
        // Predicated region
        $region49: #{tpu_custom_call.1} parent=31 // pred_check
          %p418 = pneg %p144
        $region50: #{tpu_custom_call.1} parent=31 // pred_check_branch
          %420 = sbr.rel (%p418) target = $region52
        $region51: #{tpu_custom_call.1} parent=31 // pred_region
          %s421 = smul.u32 2, %s28
          %s423 = ssub.s32 256, 256
          %424 = vsyncadd %s414, %s423
          %s425 = smul.addr %s421, 2
          %s426 = sadd.s32 %s29, %s425
          %s427 = smul.addr %s426, 128
          %s428 = scalar_lea.hbm %s3, %s427
          %s429 = sshll.u32 %s417, 4
          %s430 = int_to_ptr.vmem [resolvable:$true] %s429
          %435 = dma.vmem_to_hbm [thread:$0]  %s430, 256, %s428, %s414, 128, 256, 8
        $region52: #{tpu_custom_call.1} parent=31 // pred_fallthru
          _
      $region32: #{tpu_custom_call.1} parent=5 // pred_fallthru
        _
      %p436 = scmp.le.s32.totalorder 2, %s18
      // Predicated region
      $region53: #{tpu_custom_call.1} parent=5 // pred_check
        %p437 = pneg %p436
      $region54: #{tpu_custom_call.1} parent=5 // pred_check_branch
        %439 = sbr.rel (%p437) target = $region56
      $region55: #{tpu_custom_call.1} parent=5 // pred_region
        %s440 = ssub.s32 %s18, 2
        // Predicated region
        $region57: #{tpu_custom_call.1} parent=55 // pred_check
          %p441 = pneg %p150
        $region58: #{tpu_custom_call.1} parent=55 // pred_check_branch
          %443 = sbr.rel (%p441) target = $region60
        $region59: #{tpu_custom_call.1} parent=55 // pred_region
          %s444 = sand.u32 %s135, 1
          %s445 = scalar_lea.sflag [#allocation4], %s444
          %s446 = sand.u32 %s135, 1
          %s447 = smul.addr %s446, 16
          %s448 = scalar_lea.vmem [#allocation7], %s447
          %449 = dma.done %s445, 256
        $region60: #{tpu_custom_call.1} parent=55 // pred_fallthru
          _
      $region56: #{tpu_custom_call.1} parent=5 // pred_fallthru
        _
    $region6: #{tpu_custom_call.1} parent=1 // loop_footer
      %s22 = sadd.s32 1, %s18
    $region7: #{tpu_custom_call.1} parent=1 // loop_footer_branch
      %17 = sbr.rel target = $region3
    $region8: #{tpu_custom_call.1} parent=1 // loop_exit
      _
    %450 = vsyncpa [#allocation3], 1
    %s451 = scalar_lea.sflag [#allocation3], 1
    %452 = vsyncpa %s451, 1
    %453 = vsyncpa [#allocation6], 1
    %s454 = scalar_lea.sflag [#allocation6], 1
    %455 = vsyncpa %s454, 1
    %456 = vsyncpa [#allocation4], 1
    %s457 = scalar_lea.sflag [#allocation4], 1
    %458 = vsyncpa %s457, 1

</llo_original>
